<compile_context>
chip_gen: v6e
topology: v6e:2x2x1
jax: 0.10.0
libtpu: 0.0.40
codegen_flags: <defaults>
</compile_context>

<pallas_src>
import jax
import jax.numpy as jnp
from jax.experimental import pallas as pl
from jax.experimental.pallas import tpu as pltpu

ROWS = 24          # second normalized dim of rmsn_1
HIDDEN = 64        # normalized dim of rmsn_0 / last dim of rmsn_1
MAX_BLOCK_SAMPLES = 256

EPS0 = float(jnp.finfo(jnp.float32).eps)   # torch nn.RMSNorm(eps=None) -> finfo(dtype).eps
EPS1 = 0.01                                # rmsn_1 eps
INV_HIDDEN = 1.0 / HIDDEN
INV_TOTAL = 1.0 / (ROWS * HIDDEN)


def _rmsnorm_chain_kernel(w_ref, x_ref, o_ref):
    # w_ref: (1, 64)   rmsn_0 affine weight
    # x_ref: (B, 24, 64) f32 block of independent samples
    x = x_ref[...]                                        # (B, 24, 64)
    w = w_ref[...][None]                                  # (1, 1, 64), broadcasts

    # --- rmsn_0: RMS over the last dim (64) of every row, affine weight ---
    ms0 = jnp.sum(x * x, axis=-1, keepdims=True) * INV_HIDDEN        # (B, 24, 1)
    x1 = x * jax.lax.rsqrt(ms0 + EPS0) * w                            # (B, 24, 64)

    # --- rmsn_1: RMS over the whole (24, 64) sample, eps=0.01, no affine ---
    s = jnp.sum(x1 * x1, axis=2, keepdims=True)                       # lane reduce   -> (B, 24, 1)
    s = jnp.sum(s, axis=1, keepdims=True)                             # sublane reduce-> (B, 1, 1)
    o_ref[...] = x1 * jax.lax.rsqrt(s * INV_TOTAL + EPS1)


def _rmsnorm_chain(a, w_row):
    """Apply the fused rmsn_0 -> rmsn_1 chain to one input tensor of shape (..., 24, 64)."""
    shape = a.shape
    assert shape[-2:] == (ROWS, HIDDEN), shape
    flat = a.reshape(-1, ROWS, HIDDEN)       # leading-dim collapse only: free (no relayout)
    n = flat.shape[0]

    # >= 2 grid blocks whenever possible so the "parallel" axis can shard across the two
    # TensorCores on v7x; cap payload so each step stays a few MiB on v5e/v6e.
    block = n if n <= 1 else min(MAX_BLOCK_SAMPLES, pl.cdiv(n, 2))
    grid = (pl.cdiv(n, block),)

    # NOTE: the ragged last block (n % block != 0) computes on padded/garbage rows.  This
    # is safe only because every sample is independent and out-of-bounds writes are masked;
    # do not add cross-sample reductions without handling this explicitly.
    out = pl.pallas_call(
        _rmsnorm_chain_kernel,
        out_shape=jax.ShapeDtypeStruct(flat.shape, flat.dtype),
        grid=grid,
        in_specs=[
            pl.BlockSpec((1, HIDDEN), lambda i: (0, 0)),               # weight, resident
            pl.BlockSpec((block, ROWS, HIDDEN), lambda i: (i, 0, 0)),
        ],
        out_specs=pl.BlockSpec((block, ROWS, HIDDEN), lambda i: (i, 0, 0)),
        compiler_params=pltpu.CompilerParams(
            dimension_semantics=("parallel",),
        ),
    )(w_row, flat)
    return out.reshape(shape)


def _model_forward(x, y, z, weight):
    # TODO(synk): EPS0 is pinned to float32 finfo eps; if inputs become bf16, torch
    # RMSNorm(eps=None) would use bf16 eps and this constant must follow the dtype.
    w_row = weight.reshape(1, HIDDEN).astype(jnp.float32)
    return (_rmsnorm_chain(x, w_row),
            _rmsnorm_chain(y, w_row),
            _rmsnorm_chain(z, w_row))


model_forward = jax.jit(_model_forward)


def _reference_chain(x, weight):
    # Pure-JAX reference mirroring torch.nn.RMSNorm semantics.
    ms0 = jnp.mean(x * x, axis=-1, keepdims=True)
    x1 = x * jax.lax.rsqrt(ms0 + EPS0) * weight
    ms1 = jnp.mean(x1 * x1, axis=(-2, -1), keepdims=True)
    return x1 * jax.lax.rsqrt(ms1 + EPS1)


if __name__ == "__main__":
    key = jax.random.PRNGKey(0)
    kw, kx, ky, kz = jax.random.split(key, 4)

    # Deterministic stand-in for torch.rand(64) weight init.
    weight = jax.random.uniform(kw, (HIDDEN,), dtype=jnp.float32)

    # Small shapes consistent with the forward: last two dims must be (24, 64).
    x = jax.random.uniform(kx, (ROWS, HIDDEN), dtype=jnp.float32)
    y = jax.random.uniform(ky, (2, ROWS, HIDDEN), dtype=jnp.float32)
    z = jax.random.uniform(kz, (2, 3, ROWS, HIDDEN), dtype=jnp.float32)

    out_x, out_y, out_z = jax.block_until_ready(model_forward(x, y, z, weight))

    # Correctness check against pure-JAX reference.
    ref_x = _reference_chain(x, weight)
    ref_y = _reference_chain(y, weight)
    ref_z = _reference_chain(z, weight)
    assert jnp.allclose(out_x, ref_x, atol=1e-5, rtol=1e-5)
    assert jnp.allclose(out_y, ref_y, atol=1e-5, rtol=1e-5)
    assert jnp.allclose(out_z, ref_z, atol=1e-5, rtol=1e-5)

    print("KERNEL_OK")
</pallas_src>

<mosaic_0001>
module attributes {stable_mosaic.version = 11 : i64} {
  func.func @_rmsnorm_chain_kernel(%arg0: i32, %arg1: memref<1x64xf32, #tpu.memory_space<vmem>>, %arg2: memref<1x24x64xf32, #tpu.memory_space<vmem>>, %arg3: memref<1x24x64xf32, #tpu.memory_space<vmem>>) attributes {dimension_semantics = [#tpu.dimension_semantics<parallel>], iteration_bounds = array<i64: 2>, scalar_prefetch = 0 : i64, scratch_operands = 0 : i64, tpu.core_type = #tpu.core_type<tc>, window_params = [{pipeline_mode = #tpu.pipeline_mode<synchronous>, transform_indices = @transform_0, window_bounds = array<i64: 1, 64>}, {transform_indices = @transform_1, window_bounds = array<i64: 1, 24, 64>}, {transform_indices = @transform_2, window_bounds = array<i64: 1, 24, 64>}]} {
    %c0 = arith.constant 0 : index
    %c0_0 = arith.constant 0 : index
    %c0_1 = arith.constant 0 : index
    %0 = vector.load %arg2[%c0, %c0_0, %c0_1] : memref<1x24x64xf32, #tpu.memory_space<vmem>>, vector<1x24x64xf32>
    %c0_2 = arith.constant 0 : index
    %c0_3 = arith.constant 0 : index
    %1 = vector.load %arg1[%c0_2, %c0_3] : memref<1x64xf32, #tpu.memory_space<vmem>>, vector<1x64xf32>
    %2 = vector.shape_cast %1 : vector<1x64xf32> to vector<1x1x64xf32>
    %3 = arith.mulf %0, %0 : vector<1x24x64xf32>
    %cst = arith.constant dense<0.000000e+00> : vector<1x24xf32>
    %4 = vector.multi_reduction <add>, %3, %cst [2] : vector<1x24x64xf32> to vector<1x24xf32>
    %5 = vector.shape_cast %4 : vector<1x24xf32> to vector<1x24x1xf32>
    %cst_4 = arith.constant 1.562500e-02 : f32
    %6 = vector.broadcast %cst_4 : f32 to vector<1x24x1xf32>
    %7 = arith.mulf %5, %6 : vector<1x24x1xf32>
    %cst_5 = arith.constant 1.1920929E-7 : f32
    %8 = vector.broadcast %cst_5 : f32 to vector<1x24x1xf32>
    %9 = arith.addf %7, %8 : vector<1x24x1xf32>
    %10 = math.rsqrt %9 : vector<1x24x1xf32>
    %11 = vector.broadcast %10 : vector<1x24x1xf32> to vector<1x24x64xf32>
    %12 = arith.mulf %0, %11 : vector<1x24x64xf32>
    %13 = vector.broadcast %2 : vector<1x1x64xf32> to vector<1x24x64xf32>
    %14 = arith.mulf %12, %13 : vector<1x24x64xf32>
    %15 = arith.mulf %14, %14 : vector<1x24x64xf32>
    %cst_6 = arith.constant dense<0.000000e+00> : vector<1x24xf32>
    %16 = vector.multi_reduction <add>, %15, %cst_6 [2] : vector<1x24x64xf32> to vector<1x24xf32>
    %17 = vector.shape_cast %16 : vector<1x24xf32> to vector<1x24x1xf32>
    %cst_7 = arith.constant dense<0.000000e+00> : vector<1x1xf32>
    %18 = vector.multi_reduction <add>, %17, %cst_7 [1] : vector<1x24x1xf32> to vector<1x1xf32>
    %19 = vector.shape_cast %18 : vector<1x1xf32> to vector<1x1x1xf32>
    %cst_8 = arith.constant 6.51041686E-4 : f32
    %20 = vector.broadcast %cst_8 : f32 to vector<1x1x1xf32>
    %21 = arith.mulf %19, %20 : vector<1x1x1xf32>
    %cst_9 = arith.constant 0.00999999977 : f32
    %22 = vector.broadcast %cst_9 : f32 to vector<1x1x1xf32>
    %23 = arith.addf %21, %22 : vector<1x1x1xf32>
    %24 = math.rsqrt %23 : vector<1x1x1xf32>
    %25 = vector.broadcast %24 : vector<1x1x1xf32> to vector<1x24x64xf32>
    %26 = arith.mulf %14, %25 : vector<1x24x64xf32>
    %c0_10 = arith.constant 0 : index
    %c0_11 = arith.constant 0 : index
    %c0_12 = arith.constant 0 : index
    %27 = vector.load %arg3[%c0_10, %c0_11, %c0_12] : memref<1x24x64xf32, #tpu.memory_space<vmem>>, vector<1x24x64xf32>
    tpu.vector_store %arg3[%c0_10, %c0_11, %c0_12], %26 {strides = array<i32>} : memref<1x24x64xf32, #tpu.memory_space<vmem>>, vector<1x24x64xf32>,
    return
  }
  func.func @transform_0(%arg0: i32) -> (i32, i32) {
    %c0_i32 = arith.constant 0 : i32
    %c0_i32_0 = arith.constant 0 : i32
    %c0_i32_1 = arith.constant 0 : i32
    return %c0_i32, %c0_i32_0 : i32, i32
  }
  func.func @transform_1(%arg0: i32) -> (i32, i32, i32) {
    %c0_i32 = arith.constant 0 : i32
    %c0_i32_0 = arith.constant 0 : i32
    %c0_i32_1 = arith.constant 0 : i32
    return %arg0, %c0_i32, %c0_i32_0 : i32, i32, i32
  }
  func.func @transform_2(%arg0: i32) -> (i32, i32, i32) {
    %c0_i32 = arith.constant 0 : i32
    %c0_i32_0 = arith.constant 0 : i32
    %c0_i32_1 = arith.constant 0 : i32
    return %arg0, %c0_i32, %c0_i32_0 : i32, i32, i32
  }
}

module attributes {stable_mosaic.version = 11 : i64} {
  func.func @_rmsnorm_chain_kernel(%arg0: i32, %arg1: memref<1x64xf32, #tpu.memory_space<vmem>>, %arg2: memref<3x24x64xf32, #tpu.memory_space<vmem>>, %arg3: memref<3x24x64xf32, #tpu.memory_space<vmem>>) attributes {dimension_semantics = [#tpu.dimension_semantics<parallel>], iteration_bounds = array<i64: 2>, scalar_prefetch = 0 : i64, scratch_operands = 0 : i64, tpu.core_type = #tpu.core_type<tc>, window_params = [{pipeline_mode = #tpu.pipeline_mode<synchronous>, transform_indices = @transform_0, window_bounds = array<i64: 1, 64>}, {transform_indices = @transform_1, window_bounds = array<i64: 3, 24, 64>}, {transform_indices = @transform_2, window_bounds = array<i64: 3, 24, 64>}]} {
    %c0 = arith.constant 0 : index
    %c0_0 = arith.constant 0 : index
    %c0_1 = arith.constant 0 : index
    %0 = vector.load %arg2[%c0, %c0_0, %c0_1] : memref<3x24x64xf32, #tpu.memory_space<vmem>>, vector<3x24x64xf32>
    %c0_2 = arith.constant 0 : index
    %c0_3 = arith.constant 0 : index
    %1 = vector.load %arg1[%c0_2, %c0_3] : memref<1x64xf32, #tpu.memory_space<vmem>>, vector<1x64xf32>
    %2 = vector.shape_cast %1 : vector<1x64xf32> to vector<1x1x64xf32>
    %3 = arith.mulf %0, %0 : vector<3x24x64xf32>
    %cst = arith.constant dense<0.000000e+00> : vector<3x24xf32>
    %4 = vector.multi_reduction <add>, %3, %cst [2] : vector<3x24x64xf32> to vector<3x24xf32>
    %5 = vector.shape_cast %4 : vector<3x24xf32> to vector<3x24x1xf32>
    %cst_4 = arith.constant 1.562500e-02 : f32
    %6 = vector.broadcast %cst_4 : f32 to vector<3x24x1xf32>
    %7 = arith.mulf %5, %6 : vector<3x24x1xf32>
    %cst_5 = arith.constant 1.1920929E-7 : f32
    %8 = vector.broadcast %cst_5 : f32 to vector<3x24x1xf32>
    %9 = arith.addf %7, %8 : vector<3x24x1xf32>
    %10 = math.rsqrt %9 : vector<3x24x1xf32>
    %11 = vector.broadcast %10 : vector<3x24x1xf32> to vector<3x24x64xf32>
    %12 = arith.mulf %0, %11 : vector<3x24x64xf32>
    %13 = vector.broadcast %2 : vector<1x1x64xf32> to vector<3x24x64xf32>
    %14 = arith.mulf %12, %13 : vector<3x24x64xf32>
    %15 = arith.mulf %14, %14 : vector<3x24x64xf32>
    %cst_6 = arith.constant dense<0.000000e+00> : vector<3x24xf32>
    %16 = vector.multi_reduction <add>, %15, %cst_6 [2] : vector<3x24x64xf32> to vector<3x24xf32>
    %17 = vector.shape_cast %16 : vector<3x24xf32> to vector<3x24x1xf32>
    %cst_7 = arith.constant dense<0.000000e+00> : vector<3x1xf32>
    %18 = vector.multi_reduction <add>, %17, %cst_7 [1] : vector<3x24x1xf32> to vector<3x1xf32>
    %19 = vector.shape_cast %18 : vector<3x1xf32> to vector<3x1x1xf32>
    %cst_8 = arith.constant 6.51041686E-4 : f32
    %20 = vector.broadcast %cst_8 : f32 to vector<3x1x1xf32>
    %21 = arith.mulf %19, %20 : vector<3x1x1xf32>
    %cst_9 = arith.constant 0.00999999977 : f32
    %22 = vector.broadcast %cst_9 : f32 to vector<3x1x1xf32>
    %23 = arith.addf %21, %22 : vector<3x1x1xf32>
    %24 = math.rsqrt %23 : vector<3x1x1xf32>
    %25 = vector.broadcast %24 : vector<3x1x1xf32> to vector<3x24x64xf32>
    %26 = arith.mulf %14, %25 : vector<3x24x64xf32>
    %c0_10 = arith.constant 0 : index
    %c0_11 = arith.constant 0 : index
    %c0_12 = arith.constant 0 : index
    %27 = vector.load %arg3[%c0_10, %c0_11, %c0_12] : memref<3x24x64xf32, #tpu.memory_space<vmem>>, vector<3x24x64xf32>
    tpu.vector_store %arg3[%c0_10, %c0_11, %c0_12], %26 {strides = array<i32>} : memref<3x24x64xf32, #tpu.memory_space<vmem>>, vector<3x24x64xf32>,
    return
  }
  func.func @transform_0(%arg0: i32) -> (i32, i32) {
    %c0_i32 = arith.constant 0 : i32
    %c0_i32_0 = arith.constant 0 : i32
    %c0_i32_1 = arith.constant 0 : i32
    return %c0_i32, %c0_i32_0 : i32, i32
  }
  func.func @transform_1(%arg0: i32) -> (i32, i32, i32) {
    %c0_i32 = arith.constant 0 : i32
    %c0_i32_0 = arith.constant 0 : i32
    %c0_i32_1 = arith.constant 0 : i32
    return %arg0, %c0_i32, %c0_i32_0 : i32, i32, i32
  }
  func.func @transform_2(%arg0: i32) -> (i32, i32, i32) {
    %c0_i32 = arith.constant 0 : i32
    %c0_i32_0 = arith.constant 0 : i32
    %c0_i32_1 = arith.constant 0 : i32
    return %arg0, %c0_i32, %c0_i32_0 : i32, i32, i32
  }
}

module attributes {stable_mosaic.version = 11 : i64} {
  func.func @_rmsnorm_chain_kernel(%arg0: i32, %arg1: memref<1x64xf32, #tpu.memory_space<vmem>>, %arg2: memref<1x24x64xf32, #tpu.memory_space<vmem>>, %arg3: memref<1x24x64xf32, #tpu.memory_space<vmem>>) attributes {dimension_semantics = [#tpu.dimension_semantics<parallel>], iteration_bounds = array<i64: 1>, scalar_prefetch = 0 : i64, scratch_operands = 0 : i64, tpu.core_type = #tpu.core_type<tc>, window_params = [{pipeline_mode = #tpu.pipeline_mode<synchronous>, transform_indices = @transform_0, window_bounds = array<i64: 1, 64>}, {transform_indices = @transform_1, window_bounds = array<i64: 1, 24, 64>}, {transform_indices = @transform_2, window_bounds = array<i64: 1, 24, 64>}]} {
    %c0 = arith.constant 0 : index
    %c0_0 = arith.constant 0 : index
    %c0_1 = arith.constant 0 : index
    %0 = vector.load %arg2[%c0, %c0_0, %c0_1] : memref<1x24x64xf32, #tpu.memory_space<vmem>>, vector<1x24x64xf32>
    %c0_2 = arith.constant 0 : index
    %c0_3 = arith.constant 0 : index
    %1 = vector.load %arg1[%c0_2, %c0_3] : memref<1x64xf32, #tpu.memory_space<vmem>>, vector<1x64xf32>
    %2 = vector.shape_cast %1 : vector<1x64xf32> to vector<1x1x64xf32>
    %3 = arith.mulf %0, %0 : vector<1x24x64xf32>
    %cst = arith.constant dense<0.000000e+00> : vector<1x24xf32>
    %4 = vector.multi_reduction <add>, %3, %cst [2] : vector<1x24x64xf32> to vector<1x24xf32>
    %5 = vector.shape_cast %4 : vector<1x24xf32> to vector<1x24x1xf32>
    %cst_4 = arith.constant 1.562500e-02 : f32
    %6 = vector.broadcast %cst_4 : f32 to vector<1x24x1xf32>
    %7 = arith.mulf %5, %6 : vector<1x24x1xf32>
    %cst_5 = arith.constant 1.1920929E-7 : f32
    %8 = vector.broadcast %cst_5 : f32 to vector<1x24x1xf32>
    %9 = arith.addf %7, %8 : vector<1x24x1xf32>
    %10 = math.rsqrt %9 : vector<1x24x1xf32>
    %11 = vector.broadcast %10 : vector<1x24x1xf32> to vector<1x24x64xf32>
    %12 = arith.mulf %0, %11 : vector<1x24x64xf32>
    %13 = vector.broadcast %2 : vector<1x1x64xf32> to vector<1x24x64xf32>
    %14 = arith.mulf %12, %13 : vector<1x24x64xf32>
    %15 = arith.mulf %14, %14 : vector<1x24x64xf32>
    %cst_6 = arith.constant dense<0.000000e+00> : vector<1x24xf32>
    %16 = vector.multi_reduction <add>, %15, %cst_6 [2] : vector<1x24x64xf32> to vector<1x24xf32>
    %17 = vector.shape_cast %16 : vector<1x24xf32> to vector<1x24x1xf32>
    %cst_7 = arith.constant dense<0.000000e+00> : vector<1x1xf32>
    %18 = vector.multi_reduction <add>, %17, %cst_7 [1] : vector<1x24x1xf32> to vector<1x1xf32>
    %19 = vector.shape_cast %18 : vector<1x1xf32> to vector<1x1x1xf32>
    %cst_8 = arith.constant 6.51041686E-4 : f32
    %20 = vector.broadcast %cst_8 : f32 to vector<1x1x1xf32>
    %21 = arith.mulf %19, %20 : vector<1x1x1xf32>
    %cst_9 = arith.constant 0.00999999977 : f32
    %22 = vector.broadcast %cst_9 : f32 to vector<1x1x1xf32>
    %23 = arith.addf %21, %22 : vector<1x1x1xf32>
    %24 = math.rsqrt %23 : vector<1x1x1xf32>
    %25 = vector.broadcast %24 : vector<1x1x1xf32> to vector<1x24x64xf32>
    %26 = arith.mulf %14, %25 : vector<1x24x64xf32>
    %c0_10 = arith.constant 0 : index
    %c0_11 = arith.constant 0 : index
    %c0_12 = arith.constant 0 : index
    %27 = vector.load %arg3[%c0_10, %c0_11, %c0_12] : memref<1x24x64xf32, #tpu.memory_space<vmem>>, vector<1x24x64xf32>
    tpu.vector_store %arg3[%c0_10, %c0_11, %c0_12], %26 {strides = array<i32>} : memref<1x24x64xf32, #tpu.memory_space<vmem>>, vector<1x24x64xf32>,
    return
  }
  func.func @transform_0(%arg0: i32) -> (i32, i32) {
    %c0_i32 = arith.constant 0 : i32
    %c0_i32_0 = arith.constant 0 : i32
    %c0_i32_1 = arith.constant 0 : i32
    return %c0_i32, %c0_i32_0 : i32, i32
  }
  func.func @transform_1(%arg0: i32) -> (i32, i32, i32) {
    %c0_i32 = arith.constant 0 : i32
    %c0_i32_0 = arith.constant 0 : i32
    %c0_i32_1 = arith.constant 0 : i32
    return %arg0, %c0_i32, %c0_i32_0 : i32, i32, i32
  }
  func.func @transform_2(%arg0: i32) -> (i32, i32, i32) {
    %c0_i32 = arith.constant 0 : i32
    %c0_i32_0 = arith.constant 0 : i32
    %c0_i32_1 = arith.constant 0 : i32
    return %arg0, %c0_i32, %c0_i32_0 : i32, i32, i32
  }
}

</mosaic_0001>

<llo_original>
// kernel: _model_forward.5
$region0: #{_model_forward.5}
  #allocation0 [shape = 'u32[]', space=smem, size = 0x4, offset = 0x4, fixed_abs, tag = 'smem constant byte address 0x4 - core index']
  #allocation1 [shape = 'u32[144,128]{1,0:T(1,128)}', space=vmem, size = 0x12000, scoped, tag = 'internal scratch']
  %s0 = inlined_call_operand.vmem [shape: f32[1,64], index: 0, kind: input, shape index: {}]
  %s1 = inlined_call_operand.vmem [shape: f32[6,24,64], index: 1, kind: input, shape index: {}]
  %s2 = inlined_call_operand.hbm [shape: f32[6,24,64], index: 2, kind: output, shape index: {}]
  %s3 = sld [smem:[#allocation0]]
  $region41: #{_model_forward.5} parent=0
    _
  %s5 = ssub.s32 1, %s3
  %s6 = scalar_select 0, %s5, %s3
  $region1: #{_model_forward.5} parent=0
    #allocation2 [shape = 'u8[73728]{0}', space=vmem, size = 0x12000, scoped, tag = 'output window, operand 0']
    #allocation3 [shape = 's32[2]{0}', space=sflag, size = 0x8, scoped, tag = 'scoped memory for _model_forward.5']
    %7 = vsyncpa [#allocation3], 0
    %s8 = scalar_lea.sflag [#allocation3], 1
    %9 = vsyncpa %s8, 0
    loop: start=0, step=1, limit=4
    $region2: #{_model_forward.5} parent=1 // loop_pre_header
      _
    $region3: #{_model_forward.5} parent=1 // loop_header
      %s11 = sphi 0, %s15
      %p12 = scmp.ge.s32.totalorder %s11, 4
      %s19 = sphi 0, %s19
      %s21 = sphi 0, %s19
      %s22 = sphi 0, %s21
      %s36 = sphi 0, %s22
      %s42 = sphi 0, %s44
      %s45 = sphi 0, %s42
      %s46 = sphi 0, %s45
      %s62 = sphi 0, %s46
      %s68 = sphi 0, %s70
      %s71 = sphi 0, %s68
      %s72 = sphi 0, %s71
      %s88 = sphi 0, %s72
    $region4: #{_model_forward.5} parent=1 // loop_header_branch
      %14 = sbr.rel (%p12) target = $region8
    $region5: #{_model_forward.5} parent=1 // loop_body
      %s16 = ssub.s32 %s11, 1
      %s17 = ssub.s32 %s11, 2
      %s18 = sadd.s32 %s11, 1
      %s20 = sadd.s32 %s19, 1
      %p23 = scmp.eq.s32.totalorder %s11, 1
      %p24 = scmp.ne.s32.totalorder %s19, %s21
      %p25 = scmp.eq.s32.totalorder %s11, 0
      %p26 = por %p24, %p25
      %p27 = scmp.ne.s32.totalorder %s19, %s21
      %p28 = scmp.eq.s32.totalorder %s16, 1
      %p29 = por %p27, %p28
      %p30 = scmp.ne.s32.totalorder %s21, %s22
      %p31 = scmp.eq.s32.totalorder %s16, 0
      %p32 = por %p30, %p31
      %p33 = scmp.ne.s32.totalorder %s21, %s22
      %p34 = scmp.eq.s32.totalorder %s17, 1
      %p35 = por %p33, %p34
      %p37 = scmp.ne.s32.totalorder %s22, %s36
      %p38 = scmp.eq.s32.totalorder %s17, 0
      %p39 = por %p37, %p38
      %s40 = ssub.s32 %s11, %s18
      %p41 = scmp.eq.s32.totalorder %s40, 0
      %s43 = sadd.s32 %s42, 1
      %s44 = scalar_select %p41, %s42, %s43
      %p47 = pneg %p41
      %p48 = scmp.eq.s32.totalorder %s11, 1
      %p49 = por %p47, %p48
      %p50 = scmp.ne.s32.totalorder %s42, %s45
      %p51 = scmp.eq.s32.totalorder %s11, 0
      %p52 = por %p50, %p51
      %p53 = scmp.ne.s32.totalorder %s42, %s45
      %p54 = scmp.eq.s32.totalorder %s16, 1
      %p55 = por %p53, %p54
      %p56 = scmp.ne.s32.totalorder %s45, %s46
      %p57 = scmp.eq.s32.totalorder %s16, 0
      %p58 = por %p56, %p57
      %p59 = scmp.ne.s32.totalorder %s45, %s46
      %p60 = scmp.eq.s32.totalorder %s17, 1
      %p61 = por %p59, %p60
      %p63 = scmp.ne.s32.totalorder %s46, %s62
      %p64 = scmp.eq.s32.totalorder %s17, 0
      %p65 = por %p63, %p64
      %s66 = ssub.s32 %s11, %s18
      %p67 = scmp.eq.s32.totalorder %s66, 0
      %s69 = sadd.s32 %s68, 1
      %s70 = scalar_select %p67, %s68, %s69
      %p73 = pneg %p67
      %p74 = scmp.eq.s32.totalorder %s11, 1
      %p75 = por %p73, %p74
      %p76 = scmp.ne.s32.totalorder %s68, %s71
      %p77 = scmp.eq.s32.totalorder %s11, 0
      %p78 = por %p76, %p77
      %p79 = scmp.ne.s32.totalorder %s68, %s71
      %p80 = scmp.eq.s32.totalorder %s16, 1
      %p81 = por %p79, %p80
      %p82 = scmp.ne.s32.totalorder %s71, %s72
      %p83 = scmp.eq.s32.totalorder %s16, 0
      %p84 = por %p82, %p83
      %p85 = scmp.ne.s32.totalorder %s71, %s72
      %p86 = scmp.eq.s32.totalorder %s17, 1
      %p87 = por %p85, %p86
      %p89 = scmp.ne.s32.totalorder %s72, %s88
      %p90 = scmp.eq.s32.totalorder %s17, 0
      %p91 = por %p89, %p90
      %p92 = scmp.le.s32.totalorder 1, %s11
      %p93 = scmp.lt.s32.totalorder %s11, 3
      %p94 = pnand %p92, %p93
      %p95 = pneg %p94
      // Predicated region
      $region9: #{_model_forward.5} parent=5 // pred_check
        _
      $region10: #{_model_forward.5} parent=5 // pred_check_branch
        %97 = sbr.rel (%p94) target = $region12
      $region11: #{_model_forward.5} parent=5 // pred_region
        %s98 = ssub.s32 %s11, 1
        // Predicated region
        $region13: #{_model_forward.5} parent=11 // pred_check
          %p99 = pneg %p32
        $region14: #{_model_forward.5} parent=11 // pred_check_branch
          %101 = sbr.rel (%p99) target = $region16
        $region15: #{_model_forward.5} parent=11 // pred_region
          _
        $region16: #{_model_forward.5} parent=11 // pred_fallthru
          _
      $region12: #{_model_forward.5} parent=5 // pred_fallthru
        _
      %p102 = scmp.lt.s32.totalorder %s11, 2
      // Predicated region
      $region17: #{_model_forward.5} parent=5 // pred_check
        %p103 = pneg %p102
      $region18: #{_model_forward.5} parent=5 // pred_check_branch
        %105 = sbr.rel (%p103) target = $region20
      $region19: #{_model_forward.5} parent=5 // pred_region
        // Predicated region
        $region21: #{_model_forward.5} parent=19 // pred_check
          %p106 = pneg %p52
        $region22: #{_model_forward.5} parent=19 // pred_check_branch
          %108 = sbr.rel (%p106) target = $region24
        $region23: #{_model_forward.5} parent=19 // pred_region
          %s109 = smul.u32 3, %s11
          %p110 = scmp.lt.s32.totalorder %s109, 5
          %s111 = scalar_select %p110, %s109, 5
          %s112 = smul.addr %s111, 3
          %s113 = smul.addr %s112, 8
          %s114 = scalar_lea.vmem %s1, %s113
          %s115 = smul.u32 3, %s11
        $region24: #{_model_forward.5} parent=19 // pred_fallthru
          _
      $region20: #{_model_forward.5} parent=5 // pred_fallthru
        _
      %p116 = scmp.le.s32.totalorder 1, %s11
      %p117 = scmp.lt.s32.totalorder %s11, 3
      %p118 = pnand %p116, %p117
      %p119 = pneg %p118
      // Predicated region
      $region25: #{_model_forward.5} parent=5 // pred_check
        _
      $region26: #{_model_forward.5} parent=5 // pred_check_branch
        %121 = sbr.rel (%p118) target = $region28
      $region27: #{_model_forward.5} parent=5 // pred_region
        %s122 = ssub.s32 %s11, 1
        %p123 = pneg %p32
        %p124 = pneg %p29
        %s125 = smul.u32 3, %s16
        %p126 = scmp.lt.s32.totalorder %s125, 5
        %s127 = scalar_select %p126, %s125, 5
        %s128 = smul.addr %s127, 3
        %s129 = smul.addr %s128, 8
        %s130 = scalar_lea.vmem %s1, %s129
        %p131 = pneg %p58
        %p132 = pneg %p55
        %p133 = pneg %p84
        %p134 = pneg %p81
        %s135 = sand.u32 %s71, 1
        %s136 = scalar_lea.sflag [#allocation3], %s135
        %s137 = sand.u32 %s71, 1
        %s138 = smul.addr %s137, 72
        %s139 = scalar_lea.vmem [#allocation2], %s138
        %s140 = smul.u32 3, %s16
        %p141 = scmp.lt.s32.totalorder %s140, 5
        %s142 = scalar_select %p141, %s140, 5
        %s143 = smul.addr %s142, 3
        %s144 = smul.addr %s143, 8
        %s145 = scalar_lea.vmem %s1, %s144
        %s146 = smul.u32 3, %s16
        %s147 = smul.u32 3, %s16
        %v148 = vld [vmem:[%s145] sm:$0xff]
        %v149 = vld [vmem:[%s145 + $0x8] sm:$0xff]
        %v150 = vld [vmem:[%s145 + $0x10] sm:$0xff]
        %v151 = vld [vmem:[%s145 + $0x18] sm:$0xff]
        %v152 = vld [vmem:[%s145 + $0x20] sm:$0xff]
        %v153 = vld [vmem:[%s145 + $0x28] sm:$0xff]
        %v154 = vld [vmem:[%s145 + $0x30] sm:$0xff]
        %v155 = vld [vmem:[%s145 + $0x38] sm:$0xff]
        %v156 = vld [vmem:[%s145 + $0x40] sm:$0xff]
        %v157 = vld [vmem:[%s0] sm:$0x1]
        %v158 = vmul.f32 %v148, %v148
        %v159 = vmul.f32 %v149, %v149
        %v160 = vmul.f32 %v150, %v150
        %v161 = vmul.f32 %v151, %v151
        %v162 = vmul.f32 %v152, %v152
        %v163 = vmul.f32 %v153, %v153
        %v164 = vmul.f32 %v154, %v154
        %v165 = vmul.f32 %v155, %v155
        %v166 = vmul.f32 %v156, %v156
        %vm167 = vcmask 523264
        %v168 = vsel %vm167, %v158, 0.0
        %169 = vadd.xlane.f32.xlu0 %v168
        %v170 = vpop.xlane.xlu0 %169
        %v171 = vsel %vm167, %v159, 0.0
        %172 = vadd.xlane.f32.xlu0 %v171
        %v173 = vpop.xlane.xlu0 %172
        %v174 = vsel %vm167, %v160, 0.0
        %175 = vadd.xlane.f32.xlu0 %v174
        %v176 = vpop.xlane.xlu0 %175
        %v177 = vsel %vm167, %v161, 0.0
        %178 = vadd.xlane.f32.xlu0 %v177
        %v179 = vpop.xlane.xlu0 %178
        %v180 = vsel %vm167, %v162, 0.0
        %181 = vadd.xlane.f32.xlu0 %v180
        %v182 = vpop.xlane.xlu0 %181
        %v183 = vsel %vm167, %v163, 0.0
        %184 = vadd.xlane.f32.xlu0 %v183
        %v185 = vpop.xlane.xlu0 %184
        %v186 = vsel %vm167, %v164, 0.0
        %187 = vadd.xlane.f32.xlu0 %v186
        %v188 = vpop.xlane.xlu0 %187
        %v189 = vsel %vm167, %v165, 0.0
        %190 = vadd.xlane.f32.xlu0 %v189
        %v191 = vpop.xlane.xlu0 %190
        %v192 = vsel %vm167, %v166, 0.0
        %193 = vadd.xlane.f32.xlu0 %v192
        %v194 = vpop.xlane.xlu0 %193
        %v195 = vmul.f32 %v170, 0.015625
        %v196 = vmul.f32 %v173, 0.015625
        %v197 = vmul.f32 %v176, 0.015625
        %v198 = vmul.f32 %v179, 0.015625
        %v199 = vmul.f32 %v182, 0.015625
        %v200 = vmul.f32 %v185, 0.015625
        %v201 = vmul.f32 %v188, 0.015625
        %v202 = vmul.f32 %v191, 0.015625
        %v203 = vmul.f32 %v194, 0.015625
        %v204 = vadd.f32 %v195, 1.1920929e-07
        %v205 = vadd.f32 %v196, 1.1920929e-07
        %v206 = vadd.f32 %v197, 1.1920929e-07
        %v207 = vadd.f32 %v198, 1.1920929e-07
        %v208 = vadd.f32 %v199, 1.1920929e-07
        %v209 = vadd.f32 %v200, 1.1920929e-07
        %v210 = vadd.f32 %v201, 1.1920929e-07
        %v211 = vadd.f32 %v202, 1.1920929e-07
        %v212 = vadd.f32 %v203, 1.1920929e-07
        %v213 = vrsqrt.pop %v204
        %v214 = vrsqrt.pop %v205
        %v215 = vrsqrt.pop %v206
        %v216 = vrsqrt.pop %v207
        %v217 = vrsqrt.pop %v208
        %v218 = vrsqrt.pop %v209
        %v219 = vrsqrt.pop %v210
        %v220 = vrsqrt.pop %v211
        %v221 = vrsqrt.pop %v212
        %v222 = vmul.f32 %v148, %v213
        %v223 = vmul.f32 %v149, %v214
        %v224 = vmul.f32 %v150, %v215
        %v225 = vmul.f32 %v151, %v216
        %v226 = vmul.f32 %v152, %v217
        %v227 = vmul.f32 %v153, %v218
        %v228 = vmul.f32 %v154, %v219
        %v229 = vmul.f32 %v155, %v220
        %v230 = vmul.f32 %v156, %v221
        %v232 = vlaneseq
        %v233 = vshrl.u32 %v232, 7
        %v234 = vsub.s32 0, %v233
        %v235 = vrot.slane %v157, %v234
        %v237 = vmul.f32 %v222, %v235
        %v238 = vmul.f32 %v223, %v235
        %v239 = vmul.f32 %v224, %v235
        %v240 = vmul.f32 %v225, %v235
        %v241 = vmul.f32 %v226, %v235
        %v242 = vmul.f32 %v227, %v235
        %v243 = vmul.f32 %v228, %v235
        %v244 = vmul.f32 %v229, %v235
        %v245 = vmul.f32 %v230, %v235
        %v246 = vmul.f32 %v237, %v237
        %v247 = vmul.f32 %v238, %v238
        %v248 = vmul.f32 %v239, %v239
        %v249 = vmul.f32 %v240, %v240
        %v250 = vmul.f32 %v241, %v241
        %v251 = vmul.f32 %v242, %v242
        %v252 = vmul.f32 %v243, %v243
        %v253 = vmul.f32 %v244, %v244
        %v254 = vmul.f32 %v245, %v245
        %v255 = vsel %vm167, %v246, 0.0
        %256 = vadd.xlane.f32.xlu0 %v255
        %v257 = vpop.xlane.xlu0 %256
        %v258 = vsel %vm167, %v247, 0.0
        %259 = vadd.xlane.f32.xlu0 %v258
        %v260 = vpop.xlane.xlu0 %259
        %v261 = vsel %vm167, %v248, 0.0
        %262 = vadd.xlane.f32.xlu0 %v261
        %v263 = vpop.xlane.xlu0 %262
        %v264 = vsel %vm167, %v249, 0.0
        %265 = vadd.xlane.f32.xlu0 %v264
        %v266 = vpop.xlane.xlu0 %265
        %v267 = vsel %vm167, %v250, 0.0
        %268 = vadd.xlane.f32.xlu0 %v267
        %v269 = vpop.xlane.xlu0 %268
        %v270 = vsel %vm167, %v251, 0.0
        %271 = vadd.xlane.f32.xlu0 %v270
        %v272 = vpop.xlane.xlu0 %271
        %v273 = vsel %vm167, %v252, 0.0
        %274 = vadd.xlane.f32.xlu0 %v273
        %v275 = vpop.xlane.xlu0 %274
        %v276 = vsel %vm167, %v253, 0.0
        %277 = vadd.xlane.f32.xlu0 %v276
        %v278 = vpop.xlane.xlu0 %277
        %v279 = vsel %vm167, %v254, 0.0
        %280 = vadd.xlane.f32.xlu0 %v279
        %v281 = vpop.xlane.xlu0 %280
        %v282 = vadd.f32 %v257, %v260
        %v283 = vadd.f32 %v282, %v263
        %v284 = vrot.slane %v283, 4
        %v285 = vadd.f32 %v283, %v284
        %v286 = vrot.slane %v285, 2
        %v287 = vadd.f32 %v285, %v286
        %v288 = vrot.slane %v287, 1
        %v289 = vadd.f32 %v287, %v288
        %v290 = vadd.f32 %v266, %v269
        %v291 = vadd.f32 %v290, %v272
        %v292 = vrot.slane %v291, 4
        %v293 = vadd.f32 %v291, %v292
        %v294 = vrot.slane %v293, 2
        %v295 = vadd.f32 %v293, %v294
        %v296 = vrot.slane %v295, 1
        %v297 = vadd.f32 %v295, %v296
        %v298 = vadd.f32 %v275, %v278
        %v299 = vadd.f32 %v298, %v281
        %v300 = vrot.slane %v299, 4
        %v301 = vadd.f32 %v299, %v300
        %v302 = vrot.slane %v301, 2
        %v303 = vadd.f32 %v301, %v302
        %v304 = vrot.slane %v303, 1
        %v305 = vadd.f32 %v303, %v304
        %v306 = vmul.f32 %v289, 0.0006510417
        %v307 = vmul.f32 %v297, 0.0006510417
        %v308 = vmul.f32 %v305, 0.0006510417
        %v309 = vadd.f32 %v306, 0.01
        %v310 = vadd.f32 %v307, 0.01
        %v311 = vadd.f32 %v308, 0.01
        %v312 = vrsqrt.pop %v309
        %v313 = vrsqrt.pop %v310
        %v314 = vrsqrt.pop %v311
        %v315 = vmul.f32 %v237, %v312
        %v316 = vmul.f32 %v238, %v312
        %v317 = vmul.f32 %v239, %v312
        %v318 = vmul.f32 %v240, %v313
        %v319 = vmul.f32 %v241, %v313
        %v320 = vmul.f32 %v242, %v313
        %v321 = vmul.f32 %v243, %v314
        %v322 = vmul.f32 %v244, %v314
        %v323 = vmul.f32 %v245, %v314
        %324 = vst.msk [vmem:[%s139] sm:$0xff] %vm167, %v315
        %325 = vst.msk [vmem:[%s139 + $0x8] sm:$0xff] %vm167, %v316
        %326 = vst.msk [vmem:[%s139 + $0x10] sm:$0xff] %vm167, %v317
        %327 = vst.msk [vmem:[%s139 + $0x18] sm:$0xff] %vm167, %v318
        %328 = vst.msk [vmem:[%s139 + $0x20] sm:$0xff] %vm167, %v319
        %329 = vst.msk [vmem:[%s139 + $0x28] sm:$0xff] %vm167, %v320
        %330 = vst.msk [vmem:[%s139 + $0x30] sm:$0xff] %vm167, %v321
        %331 = vst.msk [vmem:[%s139 + $0x38] sm:$0xff] %vm167, %v322
        %332 = vst.msk [vmem:[%s139 + $0x40] sm:$0xff] %vm167, %v323
        %s333 = sand.u32 %s71, 1
        %s334 = scalar_lea.sflag [#allocation3], %s333
        %s335 = sand.u32 %s71, 1
        %s336 = smul.addr %s335, 72
        %s337 = scalar_lea.vmem [#allocation2], %s336
        // Predicated region
        $region29: #{_model_forward.5} parent=27 // pred_check
          %p338 = pneg %p81
        $region30: #{_model_forward.5} parent=27 // pred_check_branch
          %340 = sbr.rel (%p338) target = $region32
        $region31: #{_model_forward.5} parent=27 // pred_region
          %s341 = smul.u32 3, %s16
          %s343 = ssub.s32 1152, 1152
          %344 = vsyncadd %s334, %s343
          %s345 = smul.addr %s341, 3
          %s346 = smul.addr %s345, 128
          %s347 = scalar_lea.hbm %s2, %s346
          %s348 = sshll.u32 %s337, 4
          %s349 = int_to_ptr.vmem [resolvable:$true] %s348
          %354 = dma.vmem_to_hbm [thread:$0]  %s349, 1152, %s347, %s334, 128, 128, 8
        $region32: #{_model_forward.5} parent=27 // pred_fallthru
          _
      $region28: #{_model_forward.5} parent=5 // pred_fallthru
        _
      %p355 = scmp.le.s32.totalorder 2, %s11
      // Predicated region
      $region33: #{_model_forward.5} parent=5 // pred_check
        %p356 = pneg %p355
      $region34: #{_model_forward.5} parent=5 // pred_check_branch
        %358 = sbr.rel (%p356) target = $region36
      $region35: #{_model_forward.5} parent=5 // pred_region
        %s359 = ssub.s32 %s11, 2
        // Predicated region
        $region37: #{_model_forward.5} parent=35 // pred_check
          %p360 = pneg %p87
        $region38: #{_model_forward.5} parent=35 // pred_check_branch
          %362 = sbr.rel (%p360) target = $region40
        $region39: #{_model_forward.5} parent=35 // pred_region
          %s363 = sand.u32 %s72, 1
          %s364 = scalar_lea.sflag [#allocation3], %s363
          %s365 = sand.u32 %s72, 1
          %s366 = smul.addr %s365, 72
          %s367 = scalar_lea.vmem [#allocation2], %s366
          %368 = dma.done %s364, 1152
        $region40: #{_model_forward.5} parent=35 // pred_fallthru
          _
      $region36: #{_model_forward.5} parent=5 // pred_fallthru
        _
    $region6: #{_model_forward.5} parent=1 // loop_footer
      %s15 = sadd.s32 1, %s11
    $region7: #{_model_forward.5} parent=1 // loop_footer_branch
      %10 = sbr.rel target = $region3
    $region8: #{_model_forward.5} parent=1 // loop_exit
      _
    %369 = vsyncpa [#allocation3], 1
    %s370 = scalar_lea.sflag [#allocation3], 1
    %371 = vsyncpa %s370, 1

// kernel: _model_forward.3
$region0: #{_model_forward.3}
  #allocation0 [shape = 'u32[]', space=smem, size = 0x4, offset = 0x4, fixed_abs, tag = 'smem constant byte address 0x4 - core index']
  #allocation1 [shape = 'u32[144,128]{1,0:T(1,128)}', space=vmem, size = 0x12000, scoped, tag = 'internal scratch']
  %s0 = inlined_call_operand.vmem [shape: f32[1,64], index: 0, kind: input, shape index: {}]
  %s1 = inlined_call_operand.hbm [shape: f32[1,24,64], index: 1, kind: input, shape index: {}]
  %s2 = inlined_call_operand.hbm [shape: f32[1,24,64], index: 2, kind: output, shape index: {}]
  %s3 = sld [smem:[#allocation0]]
  $region22: #{_model_forward.3} parent=0
    _
  %s5 = ssub.s32 1, %s3
  %s6 = scalar_select 0, %s5, %s3
  $region1: #{_model_forward.3} parent=0
    #allocation2 [shape = 'u8[12288]{0}', space=vmem, size = 0x3000, scoped, tag = 'input window, operand 1, single buffered']
    #allocation3 [shape = 's32[1]{0}', space=sflag, size = 0x4, scoped, tag = 'scoped memory for _model_forward.3']
    #allocation4 [shape = 's32[1]{0}', space=sflag, size = 0x4, scoped, tag = 'scoped memory for _model_forward.3']
    #allocation5 [shape = 'u8[12288]{0}', space=vmem, size = 0x3000, scoped, tag = 'output window, operand 0, single buffered']
    %7 = vsyncpa [#allocation3], 0
    %8 = vsyncpa [#allocation4], 0
    // Predicated region
    $region2: #{_model_forward.3} parent=1 // pred_check
      _
    $region3: #{_model_forward.3} parent=1 // pred_check_branch
      %10 = sbr.rel (0) target = $region5
    $region4: #{_model_forward.3} parent=1 // pred_region
      _
    $region5: #{_model_forward.3} parent=1 // pred_fallthru
      _
    // Predicated region
    $region6: #{_model_forward.3} parent=1 // pred_check
      _
    $region7: #{_model_forward.3} parent=1 // pred_check_branch
      %12 = sbr.rel (0) target = $region9
    $region8: #{_model_forward.3} parent=1 // pred_region
      %s14 = ssub.s32 384, 384
      %15 = vsyncadd [#allocation3], %s14
      %s16 = sshll.u32 [#allocation2], 4
      %s17 = int_to_ptr.vmem [resolvable:$true] %s16
      %22 = dma.hbm_to_vmem [thread:$0]  %s1, 384, %s17, [#allocation3], 128, 128, 8
    $region9: #{_model_forward.3} parent=1 // pred_fallthru
      _
    // Predicated region
    $region10: #{_model_forward.3} parent=1 // pred_check
      _
    $region11: #{_model_forward.3} parent=1 // pred_check_branch
      %24 = sbr.rel (0) target = $region13
    $region12: #{_model_forward.3} parent=1 // pred_region
      %25 = dma.done [#allocation3], 384
    $region13: #{_model_forward.3} parent=1 // pred_fallthru
      _
    %v26 = vld [vmem:[#allocation2] sm:$0xff]
    %v27 = vld [vmem:[#allocation2 + $0x8] sm:$0xff]
    %v28 = vld [vmem:[#allocation2 + $0x10] sm:$0xff]
    %v29 = vld [vmem:[%s0] sm:$0x1]
    %v30 = vmul.f32 %v26, %v26
    %v31 = vmul.f32 %v27, %v27
    %v32 = vmul.f32 %v28, %v28
    %vm33 = vcmask 523264
    %v34 = vsel %vm33, %v30, 0.0
    %35 = vadd.xlane.f32.xlu0 %v34
    %v36 = vpop.xlane.xlu0 %35
    %v37 = vsel %vm33, %v31, 0.0
    %38 = vadd.xlane.f32.xlu0 %v37
    %v39 = vpop.xlane.xlu0 %38
    %v40 = vsel %vm33, %v32, 0.0
    %41 = vadd.xlane.f32.xlu0 %v40
    %v42 = vpop.xlane.xlu0 %41
    %v43 = vmul.f32 %v36, 0.015625
    %v44 = vmul.f32 %v39, 0.015625
    %v45 = vmul.f32 %v42, 0.015625
    %v46 = vadd.f32 %v43, 1.1920929e-07
    %v47 = vadd.f32 %v44, 1.1920929e-07
    %v48 = vadd.f32 %v45, 1.1920929e-07
    %v49 = vrsqrt.pop %v46
    %v50 = vrsqrt.pop %v47
    %v51 = vrsqrt.pop %v48
    %v52 = vmul.f32 %v26, %v49
    %v53 = vmul.f32 %v27, %v50
    %v54 = vmul.f32 %v28, %v51
    %v56 = vlaneseq
    %v57 = vshrl.u32 %v56, 7
    %v58 = vsub.s32 0, %v57
    %v59 = vrot.slane %v29, %v58
    %v61 = vmul.f32 %v52, %v59
    %v62 = vmul.f32 %v53, %v59
    %v63 = vmul.f32 %v54, %v59
    %v64 = vmul.f32 %v61, %v61
    %v65 = vmul.f32 %v62, %v62
    %v66 = vmul.f32 %v63, %v63
    %v67 = vsel %vm33, %v64, 0.0
    %68 = vadd.xlane.f32.xlu0 %v67
    %v69 = vpop.xlane.xlu0 %68
    %v70 = vsel %vm33, %v65, 0.0
    %71 = vadd.xlane.f32.xlu0 %v70
    %v72 = vpop.xlane.xlu0 %71
    %v73 = vsel %vm33, %v66, 0.0
    %74 = vadd.xlane.f32.xlu0 %v73
    %v75 = vpop.xlane.xlu0 %74
    %v76 = vadd.f32 %v69, %v72
    %v77 = vadd.f32 %v76, %v75
    %v78 = vrot.slane %v77, 4
    %v79 = vadd.f32 %v77, %v78
    %v80 = vrot.slane %v79, 2
    %v81 = vadd.f32 %v79, %v80
    %v82 = vrot.slane %v81, 1
    %v83 = vadd.f32 %v81, %v82
    %v84 = vmul.f32 %v83, 0.0006510417
    %v85 = vadd.f32 %v84, 0.01
    %v86 = vrsqrt.pop %v85
    %v87 = vmul.f32 %v61, %v86
    %v88 = vmul.f32 %v62, %v86
    %v89 = vmul.f32 %v63, %v86
    %90 = vst.msk [vmem:[#allocation5] sm:$0xff] %vm33, %v87
    %91 = vst.msk [vmem:[#allocation5 + $0x8] sm:$0xff] %vm33, %v88
    %92 = vst.msk [vmem:[#allocation5 + $0x10] sm:$0xff] %vm33, %v89
    // Predicated region
    $region14: #{_model_forward.3} parent=1 // pred_check
      _
    $region15: #{_model_forward.3} parent=1 // pred_check_branch
      %94 = sbr.rel (0) target = $region17
    $region16: #{_model_forward.3} parent=1 // pred_region
      %s96 = ssub.s32 384, 384
      %97 = vsyncadd [#allocation4], %s96
      %s98 = sshll.u32 [#allocation5], 4
      %s99 = int_to_ptr.vmem [resolvable:$true] %s98
      %104 = dma.vmem_to_hbm [thread:$0]  %s99, 384, %s2, [#allocation4], 128, 128, 8
    $region17: #{_model_forward.3} parent=1 // pred_fallthru
      _
    // Predicated region
    $region18: #{_model_forward.3} parent=1 // pred_check
      _
    $region19: #{_model_forward.3} parent=1 // pred_check_branch
      %106 = sbr.rel (0) target = $region21
    $region20: #{_model_forward.3} parent=1 // pred_region
      %107 = dma.done [#allocation4], 384
    $region21: #{_model_forward.3} parent=1 // pred_fallthru
      _
    %108 = vsyncpa [#allocation3], 1
    %109 = vsyncpa [#allocation4], 1

// kernel: _model_forward.4
$region0: #{_model_forward.4}
  #allocation0 [shape = 'u32[]', space=smem, size = 0x4, offset = 0x4, fixed_abs, tag = 'smem constant byte address 0x4 - core index']
  #allocation1 [shape = 'u32[144,128]{1,0:T(1,128)}', space=vmem, size = 0x12000, scoped, tag = 'internal scratch']
  %s0 = inlined_call_operand.vmem [shape: f32[1,64], index: 0, kind: input, shape index: {}]
  %s1 = inlined_call_operand.hbm [shape: f32[2,24,64], index: 1, kind: input, shape index: {}]
  %s2 = inlined_call_operand.hbm [shape: f32[2,24,64], index: 2, kind: output, shape index: {}]
  %s3 = sld [smem:[#allocation0]]
  $region45: #{_model_forward.4} parent=0
    _
  %s5 = ssub.s32 1, %s3
  %s6 = scalar_select 0, %s5, %s3
  $region1: #{_model_forward.4} parent=0
    #allocation2 [shape = 'u8[24576]{0}', space=vmem, size = 0x6000, scoped, tag = 'input window, operand 1']
    #allocation3 [shape = 's32[2]{0}', space=sflag, size = 0x8, scoped, tag = 'scoped memory for _model_forward.4']
    #allocation4 [shape = 's32[2]{0}', space=sflag, size = 0x8, scoped, tag = 'scoped memory for _model_forward.4']
    #allocation5 [shape = 'u8[24576]{0}', space=vmem, size = 0x6000, scoped, tag = 'output window, operand 0']
    %7 = vsyncpa [#allocation3], 0
    %s8 = scalar_lea.sflag [#allocation3], 1
    %9 = vsyncpa %s8, 0
    %10 = vsyncpa [#allocation4], 0
    %s11 = scalar_lea.sflag [#allocation4], 1
    %12 = vsyncpa %s11, 0
    loop: start=0, step=1, limit=4
    $region2: #{_model_forward.4} parent=1 // loop_pre_header
      _
    $region3: #{_model_forward.4} parent=1 // loop_header
      %s14 = sphi 0, %s18
      %p15 = scmp.ge.s32.totalorder %s14, 4
      %s22 = sphi 0, %s22
      %s24 = sphi 0, %s22
      %s25 = sphi 0, %s24
      %s39 = sphi 0, %s25
      %s45 = sphi 0, %s47
      %s48 = sphi 0, %s45
      %s49 = sphi 0, %s48
      %s65 = sphi 0, %s49
      %s71 = sphi 0, %s73
      %s74 = sphi 0, %s71
      %s75 = sphi 0, %s74
      %s91 = sphi 0, %s75
    $region4: #{_model_forward.4} parent=1 // loop_header_branch
      %17 = sbr.rel (%p15) target = $region8
    $region5: #{_model_forward.4} parent=1 // loop_body
      %s19 = ssub.s32 %s14, 1
      %s20 = ssub.s32 %s14, 2
      %s21 = sadd.s32 %s14, 1
      %s23 = sadd.s32 %s22, 1
      %p26 = scmp.eq.s32.totalorder %s14, 1
      %p27 = scmp.ne.s32.totalorder %s22, %s24
      %p28 = scmp.eq.s32.totalorder %s14, 0
      %p29 = por %p27, %p28
      %p30 = scmp.ne.s32.totalorder %s22, %s24
      %p31 = scmp.eq.s32.totalorder %s19, 1
      %p32 = por %p30, %p31
      %p33 = scmp.ne.s32.totalorder %s24, %s25
      %p34 = scmp.eq.s32.totalorder %s19, 0
      %p35 = por %p33, %p34
      %p36 = scmp.ne.s32.totalorder %s24, %s25
      %p37 = scmp.eq.s32.totalorder %s20, 1
      %p38 = por %p36, %p37
      %p40 = scmp.ne.s32.totalorder %s25, %s39
      %p41 = scmp.eq.s32.totalorder %s20, 0
      %p42 = por %p40, %p41
      %s43 = ssub.s32 %s14, %s21
      %p44 = scmp.eq.s32.totalorder %s43, 0
      %s46 = sadd.s32 %s45, 1
      %s47 = scalar_select %p44, %s45, %s46
      %p50 = pneg %p44
      %p51 = scmp.eq.s32.totalorder %s14, 1
      %p52 = por %p50, %p51
      %p53 = scmp.ne.s32.totalorder %s45, %s48
      %p54 = scmp.eq.s32.totalorder %s14, 0
      %p55 = por %p53, %p54
      %p56 = scmp.ne.s32.totalorder %s45, %s48
      %p57 = scmp.eq.s32.totalorder %s19, 1
      %p58 = por %p56, %p57
      %p59 = scmp.ne.s32.totalorder %s48, %s49
      %p60 = scmp.eq.s32.totalorder %s19, 0
      %p61 = por %p59, %p60
      %p62 = scmp.ne.s32.totalorder %s48, %s49
      %p63 = scmp.eq.s32.totalorder %s20, 1
      %p64 = por %p62, %p63
      %p66 = scmp.ne.s32.totalorder %s49, %s65
      %p67 = scmp.eq.s32.totalorder %s20, 0
      %p68 = por %p66, %p67
      %s69 = ssub.s32 %s14, %s21
      %p70 = scmp.eq.s32.totalorder %s69, 0
      %s72 = sadd.s32 %s71, 1
      %s73 = scalar_select %p70, %s71, %s72
      %p76 = pneg %p70
      %p77 = scmp.eq.s32.totalorder %s14, 1
      %p78 = por %p76, %p77
      %p79 = scmp.ne.s32.totalorder %s71, %s74
      %p80 = scmp.eq.s32.totalorder %s14, 0
      %p81 = por %p79, %p80
      %p82 = scmp.ne.s32.totalorder %s71, %s74
      %p83 = scmp.eq.s32.totalorder %s19, 1
      %p84 = por %p82, %p83
      %p85 = scmp.ne.s32.totalorder %s74, %s75
      %p86 = scmp.eq.s32.totalorder %s19, 0
      %p87 = por %p85, %p86
      %p88 = scmp.ne.s32.totalorder %s74, %s75
      %p89 = scmp.eq.s32.totalorder %s20, 1
      %p90 = por %p88, %p89
      %p92 = scmp.ne.s32.totalorder %s75, %s91
      %p93 = scmp.eq.s32.totalorder %s20, 0
      %p94 = por %p92, %p93
      %p95 = scmp.le.s32.totalorder 1, %s14
      %p96 = scmp.lt.s32.totalorder %s14, 3
      %p97 = pnand %p95, %p96
      %p98 = pneg %p97
      // Predicated region
      $region9: #{_model_forward.4} parent=5 // pred_check
        _
      $region10: #{_model_forward.4} parent=5 // pred_check_branch
        %100 = sbr.rel (%p97) target = $region12
      $region11: #{_model_forward.4} parent=5 // pred_region
        %s101 = ssub.s32 %s14, 1
        // Predicated region
        $region13: #{_model_forward.4} parent=11 // pred_check
          %p102 = pneg %p35
        $region14: #{_model_forward.4} parent=11 // pred_check_branch
          %104 = sbr.rel (%p102) target = $region16
        $region15: #{_model_forward.4} parent=11 // pred_region
          _
        $region16: #{_model_forward.4} parent=11 // pred_fallthru
          _
      $region12: #{_model_forward.4} parent=5 // pred_fallthru
        _
      %p105 = scmp.lt.s32.totalorder %s14, 2
      // Predicated region
      $region17: #{_model_forward.4} parent=5 // pred_check
        %p106 = pneg %p105
      $region18: #{_model_forward.4} parent=5 // pred_check_branch
        %108 = sbr.rel (%p106) target = $region20
      $region19: #{_model_forward.4} parent=5 // pred_region
        // Predicated region
        $region21: #{_model_forward.4} parent=19 // pred_check
          %p109 = pneg %p55
        $region22: #{_model_forward.4} parent=19 // pred_check_branch
          %111 = sbr.rel (%p109) target = $region24
        $region23: #{_model_forward.4} parent=19 // pred_region
          %s112 = sand.u32 %s45, 1
          %s113 = scalar_lea.sflag [#allocation3], %s112
          %s114 = sand.u32 %s45, 1
          %s115 = smul.addr %s114, 24
          %s116 = scalar_lea.vmem [#allocation2], %s115
          %s118 = ssub.s32 384, 384
          %119 = vsyncadd %s113, %s118
          %s120 = smul.addr %s14, 3
          %s121 = smul.addr %s120, 128
          %s122 = scalar_lea.hbm %s1, %s121
          %s123 = sshll.u32 %s116, 4
          %s124 = int_to_ptr.vmem [resolvable:$true] %s123
          %129 = dma.hbm_to_vmem [thread:$0]  %s122, 384, %s124, %s113, 128, 128, 8
        $region24: #{_model_forward.4} parent=19 // pred_fallthru
          _
      $region20: #{_model_forward.4} parent=5 // pred_fallthru
        _
      %p130 = scmp.le.s32.totalorder 1, %s14
      %p131 = scmp.lt.s32.totalorder %s14, 3
      %p132 = pnand %p130, %p131
      %p133 = pneg %p132
      // Predicated region
      $region25: #{_model_forward.4} parent=5 // pred_check
        _
      $region26: #{_model_forward.4} parent=5 // pred_check_branch
        %135 = sbr.rel (%p132) target = $region28
      $region27: #{_model_forward.4} parent=5 // pred_region
        %s136 = ssub.s32 %s14, 1
        %s137 = sand.u32 %s48, 1
        %s138 = scalar_lea.sflag [#allocation3], %s137
        %s139 = sand.u32 %s48, 1
        %s140 = smul.addr %s139, 24
        %s141 = scalar_lea.vmem [#allocation2], %s140
        // Predicated region
        $region29: #{_model_forward.4} parent=27 // pred_check
          %p142 = pneg %p61
        $region30: #{_model_forward.4} parent=27 // pred_check_branch
          %144 = sbr.rel (%p142) target = $region32
        $region31: #{_model_forward.4} parent=27 // pred_region
          %145 = dma.done %s138, 384
        $region32: #{_model_forward.4} parent=27 // pred_fallthru
          _
        %p146 = pneg %p35
        %p147 = pneg %p32
        %s148 = sand.u32 %s48, 1
        %s149 = scalar_lea.sflag [#allocation3], %s148
        %s150 = sand.u32 %s48, 1
        %s151 = smul.addr %s150, 24
        %s152 = scalar_lea.vmem [#allocation2], %s151
        %p153 = pneg %p61
        %p154 = pneg %p58
        %p155 = pneg %p87
        %p156 = pneg %p84
        %s157 = sand.u32 %s74, 1
        %s158 = scalar_lea.sflag [#allocation4], %s157
        %s159 = sand.u32 %s74, 1
        %s160 = smul.addr %s159, 24
        %s161 = scalar_lea.vmem [#allocation5], %s160
        %v162 = vld [vmem:[%s141] sm:$0xff]
        %v163 = vld [vmem:[%s141 + $0x8] sm:$0xff]
        %v164 = vld [vmem:[%s141 + $0x10] sm:$0xff]
        %v165 = vld [vmem:[%s0] sm:$0x1]
        %v166 = vmul.f32 %v162, %v162
        %v167 = vmul.f32 %v163, %v163
        %v168 = vmul.f32 %v164, %v164
        %vm169 = vcmask 523264
        %v170 = vsel %vm169, %v166, 0.0
        %171 = vadd.xlane.f32.xlu0 %v170
        %v172 = vpop.xlane.xlu0 %171
        %v173 = vsel %vm169, %v167, 0.0
        %174 = vadd.xlane.f32.xlu0 %v173
        %v175 = vpop.xlane.xlu0 %174
        %v176 = vsel %vm169, %v168, 0.0
        %177 = vadd.xlane.f32.xlu0 %v176
        %v178 = vpop.xlane.xlu0 %177
        %v179 = vmul.f32 %v172, 0.015625
        %v180 = vmul.f32 %v175, 0.015625
        %v181 = vmul.f32 %v178, 0.015625
        %v182 = vadd.f32 %v179, 1.1920929e-07
        %v183 = vadd.f32 %v180, 1.1920929e-07
        %v184 = vadd.f32 %v181, 1.1920929e-07
        %v185 = vrsqrt.pop %v182
        %v186 = vrsqrt.pop %v183
        %v187 = vrsqrt.pop %v184
        %v188 = vmul.f32 %v162, %v185
        %v189 = vmul.f32 %v163, %v186
        %v190 = vmul.f32 %v164, %v187
        %v192 = vlaneseq
        %v193 = vshrl.u32 %v192, 7
        %v194 = vsub.s32 0, %v193
        %v195 = vrot.slane %v165, %v194
        %v197 = vmul.f32 %v188, %v195
        %v198 = vmul.f32 %v189, %v195
        %v199 = vmul.f32 %v190, %v195
        %v200 = vmul.f32 %v197, %v197
        %v201 = vmul.f32 %v198, %v198
        %v202 = vmul.f32 %v199, %v199
        %v203 = vsel %vm169, %v200, 0.0
        %204 = vadd.xlane.f32.xlu0 %v203
        %v205 = vpop.xlane.xlu0 %204
        %v206 = vsel %vm169, %v201, 0.0
        %207 = vadd.xlane.f32.xlu0 %v206
        %v208 = vpop.xlane.xlu0 %207
        %v209 = vsel %vm169, %v202, 0.0
        %210 = vadd.xlane.f32.xlu0 %v209
        %v211 = vpop.xlane.xlu0 %210
        %v212 = vadd.f32 %v205, %v208
        %v213 = vadd.f32 %v212, %v211
        %v214 = vrot.slane %v213, 4
        %v215 = vadd.f32 %v213, %v214
        %v216 = vrot.slane %v215, 2
        %v217 = vadd.f32 %v215, %v216
        %v218 = vrot.slane %v217, 1
        %v219 = vadd.f32 %v217, %v218
        %v220 = vmul.f32 %v219, 0.0006510417
        %v221 = vadd.f32 %v220, 0.01
        %v222 = vrsqrt.pop %v221
        %v223 = vmul.f32 %v197, %v222
        %v224 = vmul.f32 %v198, %v222
        %v225 = vmul.f32 %v199, %v222
        %226 = vst.msk [vmem:[%s161] sm:$0xff] %vm169, %v223
        %227 = vst.msk [vmem:[%s161 + $0x8] sm:$0xff] %vm169, %v224
        %228 = vst.msk [vmem:[%s161 + $0x10] sm:$0xff] %vm169, %v225
        %s229 = sand.u32 %s74, 1
        %s230 = scalar_lea.sflag [#allocation4], %s229
        %s231 = sand.u32 %s74, 1
        %s232 = smul.addr %s231, 24
        %s233 = scalar_lea.vmem [#allocation5], %s232
        // Predicated region
        $region33: #{_model_forward.4} parent=27 // pred_check
          %p234 = pneg %p84
        $region34: #{_model_forward.4} parent=27 // pred_check_branch
          %236 = sbr.rel (%p234) target = $region36
        $region35: #{_model_forward.4} parent=27 // pred_region
          %s238 = ssub.s32 384, 384
          %239 = vsyncadd %s230, %s238
          %s240 = smul.addr %s19, 3
          %s241 = smul.addr %s240, 128
          %s242 = scalar_lea.hbm %s2, %s241
          %s243 = sshll.u32 %s233, 4
          %s244 = int_to_ptr.vmem [resolvable:$true] %s243
          %249 = dma.vmem_to_hbm [thread:$0]  %s244, 384, %s242, %s230, 128, 128, 8
        $region36: #{_model_forward.4} parent=27 // pred_fallthru
          _
      $region28: #{_model_forward.4} parent=5 // pred_fallthru
        _
      %p250 = scmp.le.s32.totalorder 2, %s14
      // Predicated region
      $region37: #{_model_forward.4} parent=5 // pred_check
        %p251 = pneg %p250
      $region38: #{_model_forward.4} parent=5 // pred_check_branch
        %253 = sbr.rel (%p251) target = $region40
      $region39: #{_model_forward.4} parent=5 // pred_region
        %s254 = ssub.s32 %s14, 2
        // Predicated region
        $region41: #{_model_forward.4} parent=39 // pred_check
          %p255 = pneg %p90
        $region42: #{_model_forward.4} parent=39 // pred_check_branch
          %257 = sbr.rel (%p255) target = $region44
        $region43: #{_model_forward.4} parent=39 // pred_region
          %s258 = sand.u32 %s75, 1
          %s259 = scalar_lea.sflag [#allocation4], %s258
          %s260 = sand.u32 %s75, 1
          %s261 = smul.addr %s260, 24
          %s262 = scalar_lea.vmem [#allocation5], %s261
          %263 = dma.done %s259, 384
        $region44: #{_model_forward.4} parent=39 // pred_fallthru
          _
      $region40: #{_model_forward.4} parent=5 // pred_fallthru
        _
    $region6: #{_model_forward.4} parent=1 // loop_footer
      %s18 = sadd.s32 1, %s14
    $region7: #{_model_forward.4} parent=1 // loop_footer_branch
      %13 = sbr.rel target = $region3
    $region8: #{_model_forward.4} parent=1 // loop_exit
      _
    %264 = vsyncpa [#allocation3], 1
    %s265 = scalar_lea.sflag [#allocation3], 1
    %266 = vsyncpa %s265, 1
    %267 = vsyncpa [#allocation4], 1
    %s268 = scalar_lea.sflag [#allocation4], 1
    %269 = vsyncpa %s268, 1

</llo_original>
